<compile_context>
chip_gen: v7x
topology: tpu7x:2x2x1
jax: 0.10.0
libtpu: 0.0.40
codegen_flags: <defaults>
</compile_context>

<pallas_src>
import jax
import jax.numpy as jnp
from jax.experimental import pallas as pl
from jax.experimental.pallas import tpu as pltpu


def dqn_mlp_kernel(x_ref, w1_ref, b1_ref, w2_ref, b2_ref, w3_ref, b3_ref, o_ref):
    cdt = w1_ref.dtype  # compute dtype for MXU inputs (bf16 or f32)

    # x arrives as f32; cast to the MXU compute dtype in-kernel (VPU cast is
    # free under the DMA/launch slack of this kernel).
    x = x_ref[...].astype(cdt)

    # Layer 1: Linear (MXU, f32 accumulate) + bias + ReLU in f32.
    h1 = jnp.dot(x, w1_ref[...], preferred_element_type=jnp.float32)
    h1 = jnp.maximum(h1 + b1_ref[...], 0.0)

    # Layer 2: Linear + bias + ReLU.
    h2 = jnp.dot(h1.astype(cdt), w2_ref[...], preferred_element_type=jnp.float32)
    h2 = jnp.maximum(h2 + b2_ref[...], 0.0)

    # Output layer: Linear (no activation), stored directly at true d_out.
    out = jnp.dot(h2.astype(cdt), w3_ref[...], preferred_element_type=jnp.float32)
    o_ref[...] = (out + b3_ref[...]).astype(o_ref.dtype)


def _pick_batch_block(B, *, sublane=8, target=4096, min_split_rows=512):
    """Largest sublane-aligned divisor of B that is <= target.

    No forced grid>=2 halving (pure per-step overhead on single-TC v5e/v6e).
    Only split the batch 2-way when each half is still >= min_split_rows, so a
    v7x megacore split actually amortizes the ~0.35 us step overhead.
    """
    best = None
    t = sublane
    while t <= min(B, target):
        if B % t == 0:
            best = t
        t += sublane
    if best is None:
        return B  # full-dim block is always a legal BlockSpec
    if best == B and (B // 2) >= min_split_rows and (B // 2) % sublane == 0:
        best = B // 2  # gated 2-way split (worthwhile only on multi-TC chips)
    return best


def _vmem_cap_bytes():
    """Per-generation VMEM cap with headroom; conservative fallback."""
    try:
        cap = int(pltpu.get_tpu_info().vmem_capacity_bytes)
        return max(int(cap * 0.7), 16 << 20)
    except Exception:
        return 40 << 20  # safe even on v7x's 64 MiB VMEM


def prepare_params(params, *, use_bf16=True):
    """One-time parameter preprocessing (hoisted out of the per-call hot path).

    Casts weights to the MXU compute dtype and biases to f32.  Call once and
    reuse the result across forward calls.
    """
    cdt = jnp.bfloat16 if use_bf16 else jnp.float32
    return {
        "w1": params["w1"].astype(cdt),
        "b1": params["b1"].astype(jnp.float32),
        "w2": params["w2"].astype(cdt),
        "b2": params["b2"].astype(jnp.float32),
        "w3": params["w3"].astype(cdt),
        "b3": params["b3"].astype(jnp.float32),
    }


def dqn_forward(x, prepared, *, batch_block=None):
    """DQN MLP forward pass as one fused Pallas kernel.

    x: [B, input_dim] float32 (cast to the compute dtype inside the kernel)
    prepared: output of prepare_params() -- weights [in, out] in bf16/f32,
              biases [1, out] in f32.
    """
    B, d_in = x.shape
    h1 = prepared["w1"].shape[1]
    h2 = prepared["w2"].shape[1]
    d_out = prepared["w3"].shape[1]
    cdt = prepared["w1"].dtype

    # --- batch tiling (x/out are f32 -> sublane tile of 8 rows) -------------
    sublane = 8
    tb = _pick_batch_block(B, sublane=sublane) if batch_block is None else batch_block
    assert B % tb == 0, f"batch {B} must be divisible by batch_block {tb}"
    assert tb == B or tb % sublane == 0, (
        f"batch_block {tb} must be a multiple of the sublane tile ({sublane}) "
        f"or equal to the full batch dim")
    grid = (B // tb,)

    # --- explicit VMEM budget (per-generation cap) ---------------------------
    csz = jnp.dtype(cdt).itemsize
    est = (
        2 * tb * d_in * 4                                   # x tiles (2 bufs, f32)
        + 2 * tb * d_out * 4                                # out tiles (2 bufs, f32)
        + 2 * (d_in * h1 + h1 * h2 + h2 * d_out) * csz      # weights (2 bufs)
        + 2 * (h1 + h2 + d_out) * 4                         # biases (2 bufs, f32)
        + tb * (d_in + h1 + h2 + d_out) * (4 + csz)         # intermediates / casts
    )
    vmem_limit = int(min(max(2 * est, 8 << 20), _vmem_cap_bytes()))

    return pl.pallas_call(
        dqn_mlp_kernel,
        out_shape=jax.ShapeDtypeStruct((B, d_out), jnp.float32),
        grid_spec=pl.GridSpec(
            grid=grid,
            in_specs=[
                pl.BlockSpec((tb, d_in), lambda i: (i, 0)),    # x tile over batch
                pl.BlockSpec((d_in, h1), lambda i: (0, 0)),    # w1 (grid-invariant)
                pl.BlockSpec((1, h1), lambda i: (0, 0)),       # b1
                pl.BlockSpec((h1, h2), lambda i: (0, 0)),      # w2
                pl.BlockSpec((1, h2), lambda i: (0, 0)),       # b2
                pl.BlockSpec((h2, d_out), lambda i: (0, 0)),   # w3
                pl.BlockSpec((1, d_out), lambda i: (0, 0)),    # b3
            ],
            out_specs=pl.BlockSpec((tb, d_out), lambda i: (i, 0)),
        ),
        compiler_params=pltpu.CompilerParams(
            dimension_semantics=("parallel",),
            vmem_limit_bytes=vmem_limit,
        ),
    )(x, prepared["w1"], prepared["b1"], prepared["w2"], prepared["b2"],
      prepared["w3"], prepared["b3"])


def init_params(key, input_dim, output_dim, hidden_dims=(128, 64)):
    """Deterministic synthetic init (PyTorch-style uniform fan-in scaling)."""
    dims = [input_dim] + list(hidden_dims) + [output_dim]
    params = {}
    for li, (din, dout) in enumerate(zip(dims[:-1], dims[1:]), start=1):
        key, kw, kb = jax.random.split(key, 3)
        bound = 1.0 / jnp.sqrt(jnp.asarray(din, jnp.float32))
        params[f"w{li}"] = jax.random.uniform(
            kw, (din, dout), jnp.float32, minval=-bound, maxval=bound)
        params[f"b{li}"] = jax.random.uniform(
            kb, (1, dout), jnp.float32, minval=-bound, maxval=bound)
    return params


def reference_forward(x, params, compute_dtype=jnp.bfloat16):
    """Pure-JAX reference with the same numerics (bf16 MXU inputs, f32 accum)."""
    def mm(a, w):
        return jnp.dot(a.astype(compute_dtype), w.astype(compute_dtype),
                       preferred_element_type=jnp.float32)
    h = jnp.maximum(mm(x, params["w1"]) + params["b1"], 0.0)
    h = jnp.maximum(mm(h, params["w2"]) + params["b2"], 0.0)
    return mm(h, params["w3"]) + params["b3"]


if __name__ == "__main__":
    key = jax.random.PRNGKey(0)
    B, INPUT_DIM, OUTPUT_DIM = 32, 32, 8
    HIDDEN_DIMS = (128, 64)

    kx, kp = jax.random.split(key)
    x = jax.random.normal(kx, (B, INPUT_DIM), jnp.float32)
    params = init_params(kp, INPUT_DIM, OUTPUT_DIM, HIDDEN_DIMS)

    prepared = prepare_params(params, use_bf16=True)   # one-time preprocessing
    out = dqn_forward(x, prepared)                     # tb=32 -> grid=(1,) here
    out = jax.block_until_ready(out)

    ref = reference_forward(x, params)
    assert out.shape == (B, OUTPUT_DIM)
    assert jnp.allclose(out, ref, atol=1e-3, rtol=1e-3), \
        float(jnp.max(jnp.abs(out - ref)))

    print("KERNEL_OK")
</pallas_src>

<mosaic_0001>
module attributes {stable_mosaic.version = 11 : i64} {
  func.func @dqn_mlp_kernel(%arg0: i32, %arg1: memref<32x32xf32, #tpu.memory_space<vmem>>, %arg2: memref<32x128xbf16, #tpu.memory_space<vmem>>, %arg3: memref<1x128xf32, #tpu.memory_space<vmem>>, %arg4: memref<128x64xbf16, #tpu.memory_space<vmem>>, %arg5: memref<1x64xf32, #tpu.memory_space<vmem>>, %arg6: memref<64x8xbf16, #tpu.memory_space<vmem>>, %arg7: memref<1x8xf32, #tpu.memory_space<vmem>>, %arg8: memref<32x8xf32, #tpu.memory_space<vmem>>) attributes {dimension_semantics = [#tpu.dimension_semantics<parallel>], iteration_bounds = array<i64: 1>, scalar_prefetch = 0 : i64, scratch_operands = 0 : i64, tpu.core_type = #tpu.core_type<tc>, window_params = [{transform_indices = @transform_0, window_bounds = array<i64: 32, 32>}, {pipeline_mode = #tpu.pipeline_mode<synchronous>, transform_indices = @transform_1, window_bounds = array<i64: 32, 128>}, {pipeline_mode = #tpu.pipeline_mode<synchronous>, transform_indices = @transform_2, window_bounds = array<i64: 1, 128>}, {pipeline_mode = #tpu.pipeline_mode<synchronous>, transform_indices = @transform_3, window_bounds = array<i64: 128, 64>}, {pipeline_mode = #tpu.pipeline_mode<synchronous>, transform_indices = @transform_4, window_bounds = array<i64: 1, 64>}, {pipeline_mode = #tpu.pipeline_mode<synchronous>, transform_indices = @transform_5, window_bounds = array<i64: 64, 8>}, {pipeline_mode = #tpu.pipeline_mode<synchronous>, transform_indices = @transform_6, window_bounds = array<i64: 1, 8>}, {transform_indices = @transform_7, window_bounds = array<i64: 32, 8>}]} {
    %c0 = arith.constant 0 : index
    %c0_0 = arith.constant 0 : index
    %0 = vector.load %arg1[%c0, %c0_0] : memref<32x32xf32, #tpu.memory_space<vmem>>, vector<32x32xf32>
    %1 = arith.truncf %0 : vector<32x32xf32> to vector<32x32xbf16>
    %c0_1 = arith.constant 0 : index
    %c0_2 = arith.constant 0 : index
    %2 = vector.load %arg2[%c0_1, %c0_2] : memref<32x128xbf16, #tpu.memory_space<vmem>>, vector<32x128xbf16>
    %cst = arith.constant dense<0.000000e+00> : vector<32x128xf32>
    %3 = tpu.matmul %1, %2, %cst {dimension_numbers = #tpu.dot_dimension_numbers<[1], [0], [0], [1], [0, 0, 1, 1], [], []>} : vector<32x32xbf16>, vector<32x128xbf16>, vector<32x128xf32> -> vector<32x128xf32>
    %c0_3 = arith.constant 0 : index
    %c0_4 = arith.constant 0 : index
    %4 = vector.load %arg3[%c0_3, %c0_4] : memref<1x128xf32, #tpu.memory_space<vmem>>, vector<1x128xf32>
    %5 = vector.broadcast %4 : vector<1x128xf32> to vector<32x128xf32>
    %6 = arith.addf %3, %5 : vector<32x128xf32>
    %cst_5 = arith.constant 0.000000e+00 : f32
    %7 = vector.broadcast %cst_5 : f32 to vector<32x128xf32>
    %8 = arith.maximumf %6, %7 : vector<32x128xf32>
    %9 = arith.truncf %8 : vector<32x128xf32> to vector<32x128xbf16>
    %c0_6 = arith.constant 0 : index
    %c0_7 = arith.constant 0 : index
    %10 = vector.load %arg4[%c0_6, %c0_7] : memref<128x64xbf16, #tpu.memory_space<vmem>>, vector<128x64xbf16>
    %cst_8 = arith.constant dense<0.000000e+00> : vector<32x64xf32>
    %11 = tpu.matmul %9, %10, %cst_8 {dimension_numbers = #tpu.dot_dimension_numbers<[1], [0], [0], [1], [0, 0, 1, 1], [], []>} : vector<32x128xbf16>, vector<128x64xbf16>, vector<32x64xf32> -> vector<32x64xf32>
    %c0_9 = arith.constant 0 : index
    %c0_10 = arith.constant 0 : index
    %12 = vector.load %arg5[%c0_9, %c0_10] : memref<1x64xf32, #tpu.memory_space<vmem>>, vector<1x64xf32>
    %13 = vector.broadcast %12 : vector<1x64xf32> to vector<32x64xf32>
    %14 = arith.addf %11, %13 : vector<32x64xf32>
    %cst_11 = arith.constant 0.000000e+00 : f32
    %15 = vector.broadcast %cst_11 : f32 to vector<32x64xf32>
    %16 = arith.maximumf %14, %15 : vector<32x64xf32>
    %17 = arith.truncf %16 : vector<32x64xf32> to vector<32x64xbf16>
    %c0_12 = arith.constant 0 : index
    %c0_13 = arith.constant 0 : index
    %18 = vector.load %arg6[%c0_12, %c0_13] : memref<64x8xbf16, #tpu.memory_space<vmem>>, vector<64x8xbf16>
    %cst_14 = arith.constant dense<0.000000e+00> : vector<32x8xf32>
    %19 = tpu.matmul %17, %18, %cst_14 {dimension_numbers = #tpu.dot_dimension_numbers<[1], [0], [0], [1], [0, 0, 1, 1], [], []>} : vector<32x64xbf16>, vector<64x8xbf16>, vector<32x8xf32> -> vector<32x8xf32>
    %c0_15 = arith.constant 0 : index
    %c0_16 = arith.constant 0 : index
    %20 = vector.load %arg7[%c0_15, %c0_16] : memref<1x8xf32, #tpu.memory_space<vmem>>, vector<1x8xf32>
    %21 = vector.broadcast %20 : vector<1x8xf32> to vector<32x8xf32>
    %22 = arith.addf %19, %21 : vector<32x8xf32>
    %c0_17 = arith.constant 0 : index
    %c0_18 = arith.constant 0 : index
    %23 = vector.load %arg8[%c0_17, %c0_18] : memref<32x8xf32, #tpu.memory_space<vmem>>, vector<32x8xf32>
    tpu.vector_store %arg8[%c0_17, %c0_18], %22 {strides = array<i32>} : memref<32x8xf32, #tpu.memory_space<vmem>>, vector<32x8xf32>,
    return
  }
  func.func @transform_0(%arg0: i32) -> (i32, i32) {
    %c0_i32 = arith.constant 0 : i32
    %c0_i32_0 = arith.constant 0 : i32
    return %arg0, %c0_i32 : i32, i32
  }
  func.func @transform_1(%arg0: i32) -> (i32, i32) {
    %c0_i32 = arith.constant 0 : i32
    %c0_i32_0 = arith.constant 0 : i32
    %c0_i32_1 = arith.constant 0 : i32
    return %c0_i32, %c0_i32_0 : i32, i32
  }
  func.func @transform_2(%arg0: i32) -> (i32, i32) {
    %c0_i32 = arith.constant 0 : i32
    %c0_i32_0 = arith.constant 0 : i32
    %c0_i32_1 = arith.constant 0 : i32
    return %c0_i32, %c0_i32_0 : i32, i32
  }
  func.func @transform_3(%arg0: i32) -> (i32, i32) {
    %c0_i32 = arith.constant 0 : i32
    %c0_i32_0 = arith.constant 0 : i32
    %c0_i32_1 = arith.constant 0 : i32
    return %c0_i32, %c0_i32_0 : i32, i32
  }
  func.func @transform_4(%arg0: i32) -> (i32, i32) {
    %c0_i32 = arith.constant 0 : i32
    %c0_i32_0 = arith.constant 0 : i32
    %c0_i32_1 = arith.constant 0 : i32
    return %c0_i32, %c0_i32_0 : i32, i32
  }
  func.func @transform_5(%arg0: i32) -> (i32, i32) {
    %c0_i32 = arith.constant 0 : i32
    %c0_i32_0 = arith.constant 0 : i32
    %c0_i32_1 = arith.constant 0 : i32
    return %c0_i32, %c0_i32_0 : i32, i32
  }
  func.func @transform_6(%arg0: i32) -> (i32, i32) {
    %c0_i32 = arith.constant 0 : i32
    %c0_i32_0 = arith.constant 0 : i32
    %c0_i32_1 = arith.constant 0 : i32
    return %c0_i32, %c0_i32_0 : i32, i32
  }
  func.func @transform_7(%arg0: i32) -> (i32, i32) {
    %c0_i32 = arith.constant 0 : i32
    %c0_i32_0 = arith.constant 0 : i32
    return %arg0, %c0_i32 : i32, i32
  }
}

</mosaic_0001>

<llo_original>
// kernel: tpu_custom_call.1
$region0: #{tpu_custom_call.1}
  #allocation0 [shape = 'u32[]', space=smem, size = 0x4, offset = 0x4, fixed_abs, tag = 'smem constant byte address 0x4 - core index']
  #allocation1 [shape = 'u32[144,128]{1,0:T(1,128)}', space=vmem, size = 0x12000, scoped, tag = 'internal scratch']
  %s0 = inlined_call_operand.vmem [shape: f32[32,32], index: 0, kind: input, shape index: {}]
  %s1 = inlined_call_operand.vmem [shape: bf16[32,128], index: 1, kind: input, shape index: {}]
  %s2 = inlined_call_operand.vmem [shape: f32[1,128], index: 2, kind: input, shape index: {}]
  %s3 = inlined_call_operand.vmem [shape: bf16[128,64], index: 3, kind: input, shape index: {}]
  %s4 = inlined_call_operand.vmem [shape: f32[1,64], index: 4, kind: input, shape index: {}]
  %s5 = inlined_call_operand.vmem [shape: bf16[64,8], index: 5, kind: input, shape index: {}]
  %s6 = inlined_call_operand.vmem [shape: f32[1,8], index: 6, kind: input, shape index: {}]
  %s7 = inlined_call_operand.vmem [shape: f32[32,8], index: 7, kind: output, shape index: {}]
  %s8 = sld [smem:[#allocation0]]
  $region38: #{tpu_custom_call.1} parent=0
    _
  %s10 = ssub.s32 1, %s8
  %s11 = scalar_select 0, %s10, %s8
  // Predicated region
  $region2: #{tpu_custom_call.1} parent=0 // pred_check
    _
  $region3: #{tpu_custom_call.1} parent=0 // pred_check_branch
    %13 = sbr.rel (0) target = $region5
  $region4: #{tpu_custom_call.1} parent=0 // pred_region
    _
  $region5: #{tpu_custom_call.1} parent=0 // pred_fallthru
    _
  // Predicated region
  $region6: #{tpu_custom_call.1} parent=0 // pred_check
    _
  $region7: #{tpu_custom_call.1} parent=0 // pred_check_branch
    %15 = sbr.rel (0) target = $region9
  $region8: #{tpu_custom_call.1} parent=0 // pred_region
    _
  $region9: #{tpu_custom_call.1} parent=0 // pred_fallthru
    _
  // Predicated region
  $region10: #{tpu_custom_call.1} parent=0 // pred_check
    _
  $region11: #{tpu_custom_call.1} parent=0 // pred_check_branch
    %17 = sbr.rel (0) target = $region13
  $region12: #{tpu_custom_call.1} parent=0 // pred_region
    _
  $region13: #{tpu_custom_call.1} parent=0 // pred_fallthru
    _
  // Predicated region
  $region14: #{tpu_custom_call.1} parent=0 // pred_check
    _
  $region15: #{tpu_custom_call.1} parent=0 // pred_check_branch
    %19 = sbr.rel (0) target = $region17
  $region16: #{tpu_custom_call.1} parent=0 // pred_region
    _
  $region17: #{tpu_custom_call.1} parent=0 // pred_fallthru
    _
  // Predicated region
  $region18: #{tpu_custom_call.1} parent=0 // pred_check
    _
  $region19: #{tpu_custom_call.1} parent=0 // pred_check_branch
    %21 = sbr.rel (0) target = $region21
  $region20: #{tpu_custom_call.1} parent=0 // pred_region
    _
  $region21: #{tpu_custom_call.1} parent=0 // pred_fallthru
    _
  // Predicated region
  $region22: #{tpu_custom_call.1} parent=0 // pred_check
    _
  $region23: #{tpu_custom_call.1} parent=0 // pred_check_branch
    %23 = sbr.rel (0) target = $region25
  $region24: #{tpu_custom_call.1} parent=0 // pred_region
    _
  $region25: #{tpu_custom_call.1} parent=0 // pred_fallthru
    _
  // Predicated region
  $region26: #{tpu_custom_call.1} parent=0 // pred_check
    _
  $region27: #{tpu_custom_call.1} parent=0 // pred_check_branch
    %25 = sbr.rel (0) target = $region29
  $region28: #{tpu_custom_call.1} parent=0 // pred_region
    _
  $region29: #{tpu_custom_call.1} parent=0 // pred_fallthru
    _
  %v27 = vld [vmem:[%s0] sm:$0xff]
  %v28 = vld [vmem:[%s0 + $0x8] sm:$0xff]
  %v29 = vld [vmem:[%s0 + $0x10] sm:$0xff]
  %v30 = vld [vmem:[%s0 + $0x18] sm:$0xff]
  %v31 = vpack.c.bf16 %v28, %v27
  %v32 = vpack.c.bf16 %v30, %v29
  %v33 = vld [vmem:[%s1] sm:$0xf]
  %v34 = vld [vmem:[%s1 + $0x4] sm:$0xf]
  %v35 = vld [vmem:[%s1 + $0x8] sm:$0xf]
  %v36 = vld [vmem:[%s1 + $0xc] sm:$0xf]
  %v37 = vld [vmem:[%s2] sm:$0x1]
  %v39 = vlaneseq
  %v40 = vshrl.u32 %v39, 7
  %v41 = vsub.s32 0, %v40
  %v42 = vrot.slane %v37, %v41
  %v48 = vunpack.c.l.b16 %v33
  %v49 = vunpack.c.l.b16 %v34
  %v50 = vunpack.c.l.b16 %v35
  %v51 = vunpack.c.l.b16 %v36
  %v52 = vpack.c.b16 %v49, %v48
  %v53 = vpack.c.b16 %v51, %v50
  %vm56 = vcmask 261120
  %v58 = vsel %vm56, %v31, 0
  %v61 = vsel %vm56, %v32, 0
  %63 = vmatprep.subr.bf16.mxu0 0
  %64 = vmatpush1.bf16.msra.mxu0 %v52
  %65 = vmatprep.subr.bf16.mxu0 0
  %66 = vmatpush1.bf16.msra.mxu0 %v53
  %67 = vmatprep.subr.bf16.mxu0 0
  %68 = vmatpush1.bf16.msra.mxu0 0
  %69 = vmatprep.subr.bf16.mxu0 0
  %70 = vmatpush1.bf16.msra.mxu0 0
  %71 = vmatprep.subr.bf16.mxu0 0
  %72 = vmatpush1.bf16.msra.mxu0 0
  %73 = vmatprep.subr.bf16.mxu0 0
  %74 = vmatpush1.bf16.msra.mxu0 0
  %75 = vmatprep.subr.bf16.mxu0 0
  %76 = vmatpush1.bf16.msra.mxu0 0
  %77 = vmatprep.subr.bf16.mxu0 0
  %78 = vmatpush1.bf16.msra.mxu0 0
  %79 = vmatprep.subr.bf16.mxu0 0
  %80 = vmatpush1.bf16.msra.mxu0 0
  %81 = vmatprep.subr.bf16.mxu0 0
  %82 = vmatpush1.bf16.msra.mxu0 0
  %83 = vmatprep.subr.bf16.mxu0 0
  %84 = vmatpush1.bf16.msra.mxu0 0
  %85 = vmatprep.subr.bf16.mxu0 0
  %86 = vmatpush1.bf16.msra.mxu0 0
  %87 = vmatprep.subr.bf16.mxu0 0
  %88 = vmatpush1.bf16.msra.mxu0 0
  %89 = vmatprep.subr.bf16.mxu0 0
  %90 = vmatpush1.bf16.msra.mxu0 0
  %91 = vmatprep.subr.bf16.mxu0 0
  %92 = vmatpush1.bf16.msra.mxu0 0
  %93 = vmatprep.subr.bf16.mxu0 0
  %94 = vmatpush1.bf16.msra.mxu0 0
  %95 = vmatprep.mubr.bf16.mxu0 0
  %96 = vmatmul.mubr.bf16.gmra.mrb[0].mxu0 %v58
  %v97 = vpop.f32.mrb[0].mxu0
  %v98 = vadd.f32 %v42, %v97
  %v99 = vpop.f32.mrb[0].mxu0
  %v100 = vpop.f32.mrb[0].mxu0
  %v101 = vadd.f32 %v42, %v100
  %v102 = vpop.f32.mrb[0].mxu0
  %103 = vmatprep.mubr.bf16.mxu0 0
  %104 = vmatmul.mubr.bf16.gmra.mrb[0].mxu0 %v61
  %v105 = vpop.f32.mrb[0].mxu0
  %v106 = vadd.f32 %v42, %v105
  %v107 = vpop.f32.mrb[0].mxu0
  %v108 = vpop.f32.mrb[0].mxu0
  %v109 = vadd.f32 %v42, %v108
  %v110 = vpop.f32.mrb[0].mxu0
  %111 = vdwg.mxu0
  %v112 = vmax.f32 %v98, 0.0
  %v113 = vmax.f32 %v101, 0.0
  %v114 = vmax.f32 %v106, 0.0
  %v115 = vmax.f32 %v109, 0.0
  %v116 = vpack.c.bf16 %v113, %v112
  %v117 = vpack.c.bf16 %v115, %v114
  %v118 = vld [vmem:[%s3] sm:$0xf]
  %v119 = vld [vmem:[%s3 + $0x4] sm:$0xf]
  %v120 = vld [vmem:[%s3 + $0x8] sm:$0xf]
  %v121 = vld [vmem:[%s3 + $0xc] sm:$0xf]
  %v122 = vld [vmem:[%s3 + $0x10] sm:$0xf]
  %v123 = vld [vmem:[%s3 + $0x14] sm:$0xf]
  %v124 = vld [vmem:[%s3 + $0x18] sm:$0xf]
  %v125 = vld [vmem:[%s3 + $0x1c] sm:$0xf]
  %v126 = vld [vmem:[%s3 + $0x20] sm:$0xf]
  %v127 = vld [vmem:[%s3 + $0x24] sm:$0xf]
  %v128 = vld [vmem:[%s3 + $0x28] sm:$0xf]
  %v129 = vld [vmem:[%s3 + $0x2c] sm:$0xf]
  %v130 = vld [vmem:[%s3 + $0x30] sm:$0xf]
  %v131 = vld [vmem:[%s3 + $0x34] sm:$0xf]
  %v132 = vld [vmem:[%s3 + $0x38] sm:$0xf]
  %v133 = vld [vmem:[%s3 + $0x3c] sm:$0xf]
  %v134 = vld [vmem:[%s4] sm:$0x1]
  %v136 = vlaneseq
  %v137 = vshrl.u32 %v136, 7
  %v138 = vsub.s32 0, %v137
  %v139 = vrot.slane %v134, %v138
  %v157 = vunpack.c.l.b16 %v118
  %v158 = vunpack.c.l.b16 %v119
  %v159 = vunpack.c.l.b16 %v120
  %v160 = vunpack.c.l.b16 %v121
  %v161 = vunpack.c.l.b16 %v122
  %v162 = vunpack.c.l.b16 %v123
  %v163 = vunpack.c.l.b16 %v124
  %v164 = vunpack.c.l.b16 %v125
  %v165 = vunpack.c.l.b16 %v126
  %v166 = vunpack.c.l.b16 %v127
  %v167 = vunpack.c.l.b16 %v128
  %v168 = vunpack.c.l.b16 %v129
  %v169 = vunpack.c.l.b16 %v130
  %v170 = vunpack.c.l.b16 %v131
  %v171 = vunpack.c.l.b16 %v132
  %v172 = vunpack.c.l.b16 %v133
  %v173 = vpack.c.b16 %v158, %v157
  %v174 = vpack.c.b16 %v160, %v159
  %v175 = vpack.c.b16 %v162, %v161
  %v176 = vpack.c.b16 %v164, %v163
  %v177 = vpack.c.b16 %v166, %v165
  %v178 = vpack.c.b16 %v168, %v167
  %v179 = vpack.c.b16 %v170, %v169
  %v180 = vpack.c.b16 %v172, %v171
  %189 = vmatprep.subr.bf16.mxu0 0
  %190 = vmatpush1.bf16.msra.mxu0 %v173
  %191 = vmatprep.subr.bf16.mxu0 0
  %192 = vmatpush1.bf16.msra.mxu0 %v174
  %193 = vmatprep.subr.bf16.mxu0 0
  %194 = vmatpush1.bf16.msra.mxu0 %v175
  %195 = vmatprep.subr.bf16.mxu0 0
  %196 = vmatpush1.bf16.msra.mxu0 %v176
  %197 = vmatprep.subr.bf16.mxu0 0
  %198 = vmatpush1.bf16.msra.mxu0 %v177
  %199 = vmatprep.subr.bf16.mxu0 0
  %200 = vmatpush1.bf16.msra.mxu0 %v178
  %201 = vmatprep.subr.bf16.mxu0 0
  %202 = vmatpush1.bf16.msra.mxu0 %v179
  %203 = vmatprep.subr.bf16.mxu0 0
  %204 = vmatpush1.bf16.msra.mxu0 %v180
  %205 = vmatprep.subr.bf16.mxu0 0
  %206 = vmatpush1.bf16.msra.mxu0 0
  %207 = vmatprep.subr.bf16.mxu0 0
  %208 = vmatpush1.bf16.msra.mxu0 0
  %209 = vmatprep.subr.bf16.mxu0 0
  %210 = vmatpush1.bf16.msra.mxu0 0
  %211 = vmatprep.subr.bf16.mxu0 0
  %212 = vmatpush1.bf16.msra.mxu0 0
  %213 = vmatprep.subr.bf16.mxu0 0
  %214 = vmatpush1.bf16.msra.mxu0 0
  %215 = vmatprep.subr.bf16.mxu0 0
  %216 = vmatpush1.bf16.msra.mxu0 0
  %217 = vmatprep.subr.bf16.mxu0 0
  %218 = vmatpush1.bf16.msra.mxu0 0
  %219 = vmatprep.subr.bf16.mxu0 0
  %220 = vmatpush1.bf16.msra.mxu0 0
  %221 = vmatprep.mubr.bf16.mxu0 0
  %222 = vmatmul.mubr.bf16.gmra.mrb[0].mxu0 %v116
  %v223 = vpop.f32.mrb[0].mxu0
  %v224 = vadd.f32 %v139, %v223
  %v225 = vpop.f32.mrb[0].mxu0
  %v226 = vpop.f32.mrb[0].mxu0
  %v227 = vadd.f32 %v139, %v226
  %v228 = vpop.f32.mrb[0].mxu0
  %229 = vmatprep.mubr.bf16.mxu0 0
  %230 = vmatmul.mubr.bf16.gmra.mrb[0].mxu0 %v117
  %v231 = vpop.f32.mrb[0].mxu0
  %v232 = vadd.f32 %v139, %v231
  %v233 = vpop.f32.mrb[0].mxu0
  %v234 = vpop.f32.mrb[0].mxu0
  %v235 = vadd.f32 %v139, %v234
  %v236 = vpop.f32.mrb[0].mxu0
  %237 = vdwg.mxu0
  %v238 = vmax.f32 %v224, 0.0
  %v239 = vmax.f32 %v227, 0.0
  %v240 = vmax.f32 %v232, 0.0
  %v241 = vmax.f32 %v235, 0.0
  %v242 = vpack.c.bf16 %v239, %v238
  %v243 = vpack.c.bf16 %v241, %v240
  %v244 = vld [vmem:[%s5] sm:$0xf]
  %v245 = vld [vmem:[%s5 + $0x4] sm:$0xf]
  %v246 = vld [vmem:[%s5 + $0x8] sm:$0xf]
  %v247 = vld [vmem:[%s5 + $0xc] sm:$0xf]
  %v248 = vld [vmem:[%s5 + $0x10] sm:$0xf]
  %v249 = vld [vmem:[%s5 + $0x14] sm:$0xf]
  %v250 = vld [vmem:[%s5 + $0x18] sm:$0xf]
  %v251 = vld [vmem:[%s5 + $0x1c] sm:$0xf]
  %v252 = vld [vmem:[%s6] sm:$0x1]
  %v254 = vlaneseq
  %v255 = vshrl.u32 %v254, 7
  %v256 = vsub.s32 0, %v255
  %v257 = vrot.slane %v252, %v256
  %v267 = vunpack.c.l.b16 %v244
  %v268 = vunpack.c.l.b16 %v245
  %v269 = vunpack.c.l.b16 %v246
  %v270 = vunpack.c.l.b16 %v247
  %v271 = vunpack.c.l.b16 %v248
  %v272 = vunpack.c.l.b16 %v249
  %v273 = vunpack.c.l.b16 %v250
  %v274 = vunpack.c.l.b16 %v251
  %v275 = vpack.c.b16 %v268, %v267
  %v276 = vpack.c.b16 %v270, %v269
  %v277 = vpack.c.b16 %v272, %v271
  %v278 = vpack.c.b16 %v274, %v273
  %vm283 = vcmask 523264
  %v285 = vsel %vm283, %v242, 0
  %v288 = vsel %vm283, %v243, 0
  %290 = vmatprep.subr.bf16.mxu0 0
  %291 = vmatpush1.bf16.msra.mxu0 %v275
  %292 = vmatprep.subr.bf16.mxu0 0
  %293 = vmatpush1.bf16.msra.mxu0 %v276
  %294 = vmatprep.subr.bf16.mxu0 0
  %295 = vmatpush1.bf16.msra.mxu0 %v277
  %296 = vmatprep.subr.bf16.mxu0 0
  %297 = vmatpush1.bf16.msra.mxu0 %v278
  %298 = vmatprep.subr.bf16.mxu0 0
  %299 = vmatpush1.bf16.msra.mxu0 0
  %300 = vmatprep.subr.bf16.mxu0 0
  %301 = vmatpush1.bf16.msra.mxu0 0
  %302 = vmatprep.subr.bf16.mxu0 0
  %303 = vmatpush1.bf16.msra.mxu0 0
  %304 = vmatprep.subr.bf16.mxu0 0
  %305 = vmatpush1.bf16.msra.mxu0 0
  %306 = vmatprep.subr.bf16.mxu0 0
  %307 = vmatpush1.bf16.msra.mxu0 0
  %308 = vmatprep.subr.bf16.mxu0 0
  %309 = vmatpush1.bf16.msra.mxu0 0
  %310 = vmatprep.subr.bf16.mxu0 0
  %311 = vmatpush1.bf16.msra.mxu0 0
  %312 = vmatprep.subr.bf16.mxu0 0
  %313 = vmatpush1.bf16.msra.mxu0 0
  %314 = vmatprep.subr.bf16.mxu0 0
  %315 = vmatpush1.bf16.msra.mxu0 0
  %316 = vmatprep.subr.bf16.mxu0 0
  %317 = vmatpush1.bf16.msra.mxu0 0
  %318 = vmatprep.subr.bf16.mxu0 0
  %319 = vmatpush1.bf16.msra.mxu0 0
  %320 = vmatprep.subr.bf16.mxu0 0
  %321 = vmatpush1.bf16.msra.mxu0 0
  %322 = vmatprep.mubr.bf16.mxu0 0
  %323 = vmatmul.mubr.bf16.gmra.mrb[0].mxu0 %v285
  %v324 = vpop.f32.mrb[0].mxu0
  %v325 = vadd.f32 %v257, %v324
  %v326 = vpop.f32.mrb[0].mxu0
  %v327 = vpop.f32.mrb[0].mxu0
  %v328 = vadd.f32 %v257, %v327
  %v329 = vpop.f32.mrb[0].mxu0
  %330 = vmatprep.mubr.bf16.mxu0 0
  %331 = vmatmul.mubr.bf16.gmra.mrb[0].mxu0 %v288
  %v332 = vpop.f32.mrb[0].mxu0
  %v333 = vadd.f32 %v257, %v332
  %v334 = vpop.f32.mrb[0].mxu0
  %v335 = vpop.f32.mrb[0].mxu0
  %v336 = vadd.f32 %v257, %v335
  %v337 = vpop.f32.mrb[0].mxu0
  %338 = vdwg.mxu0
  %vm339 = vcmask 64512
  %340 = vst.msk [vmem:[%s7] sm:$0xff] %vm339, %v325
  %341 = vst.msk [vmem:[%s7 + $0x8] sm:$0xff] %vm339, %v328
  %342 = vst.msk [vmem:[%s7 + $0x10] sm:$0xff] %vm339, %v333
  %343 = vst.msk [vmem:[%s7 + $0x18] sm:$0xff] %vm339, %v336
  // Predicated region
  $region30: #{tpu_custom_call.1} parent=0 // pred_check
    _
  $region31: #{tpu_custom_call.1} parent=0 // pred_check_branch
    %345 = sbr.rel (0) target = $region33
  $region32: #{tpu_custom_call.1} parent=0 // pred_region
    _
  $region33: #{tpu_custom_call.1} parent=0 // pred_fallthru
    _
  // Predicated region
  $region34: #{tpu_custom_call.1} parent=0 // pred_check
    _
  $region35: #{tpu_custom_call.1} parent=0 // pred_check_branch
    %347 = sbr.rel (0) target = $region37
  $region36: #{tpu_custom_call.1} parent=0 // pred_region
    _
  $region37: #{tpu_custom_call.1} parent=0 // pred_fallthru
    _

</llo_original>
